<compile_context>
chip_gen: v6e
topology: v6e:2x2x1
jax: 0.10.0
libtpu: 0.0.40
codegen_flags: <defaults>
</compile_context>

<pallas_src>
import functools

import numpy as np
import jax
import jax.numpy as jnp
from jax.experimental import pallas as pl
from jax.experimental.pallas import tpu as pltpu

try:  # prefer the C implementation if available
    from scipy.optimize import linear_sum_assignment as _scipy_lsa
except Exception:  # pragma: no cover
    _scipy_lsa = None


def _round_up(x, m):
    return ((x + m - 1) // m) * m


def _vmem_capacity_bytes():
    """Chip VMEM capacity (v5e/v6e: 128 MiB, v7x: 64 MiB); conservative fallback."""
    try:
        info = pltpu.get_tpu_info()
        cap = getattr(info, "vmem_capacity_bytes", None)
        if cap:
            return int(cap)
    except Exception:
        pass
    return 64 * 1024 * 1024


def _vmem_limit_bytes(cap):
    return int(min(int(cap * 0.8), 100 * 1024 * 1024))


# ----------------------------------------------------------------------------
# Pallas kernel 1: pairwise Euclidean distance matrix (torch.cdist, p=2)
# dist[i, j] = || x[i, :] - u[j, :] ||_2, tiled over the output.
# Row norms are precomputed in the wrapper; only the cross term runs per tile.
# ----------------------------------------------------------------------------
def _cdist_kernel(x_ref, u_ref, xsq_ref, usq_ref, d_ref):
    # MXU: contract over the feature dim of both operands (no u.T materialization).
    cross = jax.lax.dot_general(
        x_ref[...], u_ref[...],
        dimension_numbers=(((1,), (1,)), ((), ())),
        preferred_element_type=jnp.float32)                      # (tn, tm) f32
    d2 = (xsq_ref[...] + usq_ref[...]) - 2.0 * cross             # (tn,1)+(1,tm) broadcast
    d_ref[...] = jnp.sqrt(jnp.maximum(d2, 0.0))


def _choose_cdist_tiles(n8, m128, d, budget_bytes, in_itemsize):
    """Pick (tn, tm) so the double-buffered working set fits the per-chip budget.
    Shrink tm first: keeping tn large cuts the (N/tn)x re-streaming of u."""
    tn = min(1024, n8)       # multiple of 8
    tm = min(2048, m128)     # multiple of 128

    def working_set(a, b):
        return (2 * a * b * 4                          # double-buffered f32 output tile
                + 2 * (a + b) * d * in_itemsize        # double-buffered input tiles
                + 2 * (a + b) * 4)                     # double-buffered norm vectors

    while working_set(tn, tm) > budget_bytes and tm > 128:
        tm = max(128, _round_up(tm // 2, 128))
    while working_set(tn, tm) > budget_bytes and tn > 8:
        tn = max(8, _round_up(tn // 2, 8))
    return tn, tm


def pallas_cdist(x, u, *, cross_in_dtype=jnp.bfloat16):
    n, d = x.shape
    m, d2 = u.shape
    assert d == d2

    n8 = _round_up(n, 8)        # sublane alignment only (<=7 extra rows)
    m128 = _round_up(m, 128)    # lane alignment only (<=127 extra rows)

    x32 = x.astype(jnp.float32)
    u32 = u.astype(jnp.float32)

    # Squared row norms, computed once (f32), padded to alignment.
    xsq = jnp.pad(jnp.sum(x32 * x32, axis=1, keepdims=True), ((0, n8 - n), (0, 0)))
    usq = jnp.pad(jnp.sum(u32 * u32, axis=1)[None, :], ((0, 0), (0, m128 - m)))

    # Wrapper-side bf16 cast of the MXU operands (halves input DMA); pad+cast fuse under jit.
    x_in = jnp.pad(x32, ((0, n8 - n), (0, 0))).astype(cross_in_dtype)
    u_in = jnp.pad(u32, ((0, m128 - m), (0, 0))).astype(cross_in_dtype)

    cap = _vmem_capacity_bytes()
    in_itemsize = jnp.dtype(cross_in_dtype).itemsize
    tn, tm = _choose_cdist_tiles(n8, m128, d, int(cap * 0.4), in_itemsize)

    grid = (pl.cdiv(n8, tn), pl.cdiv(m128, tm))

    dist = pl.pallas_call(
        _cdist_kernel,
        out_shape=jax.ShapeDtypeStruct((n8, m128), jnp.float32),
        grid=grid,
        in_specs=[
            pl.BlockSpec((tn, d), lambda i, j: (i, 0)),    # x tile (bf16), D fully resident
            pl.BlockSpec((tm, d), lambda i, j: (j, 0)),    # u tile (bf16), D fully resident
            pl.BlockSpec((tn, 1), lambda i, j: (i, 0)),    # precomputed ||x||^2 (f32)
            pl.BlockSpec((1, tm), lambda i, j: (0, j)),    # precomputed ||u||^2 (f32), lane row
        ],
        out_specs=pl.BlockSpec((tn, tm), lambda i, j: (i, j)),
        compiler_params=pltpu.CompilerParams(
            dimension_semantics=("parallel", "parallel"),
            vmem_limit_bytes=_vmem_limit_bytes(cap),
        ),
        cost_estimate=pl.CostEstimate(
            flops=int(2 * n8 * m128 * d + 4 * n8 * m128),
            transcendentals=int(n8 * m128),
            bytes_accessed=int(in_itemsize * (n8 + m128) * d
                               + 4 * (n8 + m128) + 4 * n8 * m128),
        ),
    )(x_in, u_in, xsq, usq)
    return dist[:n, :m]


# ----------------------------------------------------------------------------
# Pallas kernel 2: Huber loss with mean reduction over a lane-dense slab.
# per-elem: 0.5*d^2 if |d| <= delta else delta*(|d| - delta/2); mean over true count.
# ----------------------------------------------------------------------------
def _huber_kernel(x_ref, y_ref, out_ref, acc_ref, *, delta):
    @pl.when(pl.program_id(1) == 0)
    def _():
        acc_ref[...] = jnp.zeros_like(acc_ref)

    d = x_ref[...] - y_ref[...]                       # (1, tb, 128) f32
    ad = jnp.abs(d)
    vals = jnp.where(ad <= delta, 0.5 * d * d, delta * (ad - 0.5 * delta))
    # VPU-only partial reduce onto the (8,128) accumulator (no per-step cross-lane reduce).
    acc_ref[...] += jnp.sum(vals.reshape(-1, 8, 128), axis=0)

    @pl.when(pl.program_id(1) == pl.num_programs(1) - 1)
    def _():
        out_ref[...] = acc_ref[...][None]             # (1, 8, 128) partial sums per split


def pallas_huber_mean(x, y, delta, *, tb_max=8192, n_splits=2):
    n, d = x.shape
    n_elem = n * d
    lanes = 128

    rows_needed = -(-n_elem // lanes)
    n_splits = max(1, min(n_splits, rows_needed))
    rows_per_split = -(-rows_needed // n_splits)
    tb = min(tb_max, _round_up(rows_per_split, 8))
    rows_per_split = _round_up(rows_per_split, tb)
    padded_total = n_splits * rows_per_split * lanes

    def to_slab(a):
        # Lane-dense layout; zero-pad is load-bearing (padded elems contribute 0 to the sum).
        flat = a.astype(jnp.float32).reshape(-1)
        return jnp.pad(flat, (0, padded_total - n_elem)).reshape(
            n_splits, rows_per_split, lanes)

    xs, ys = to_slab(x), to_slab(y)

    cap = _vmem_capacity_bytes()
    grid = (n_splits, rows_per_split // tb)
    kernel = functools.partial(_huber_kernel, delta=float(delta))

    partial_sums = pl.pallas_call(
        kernel,
        out_shape=jax.ShapeDtypeStruct((n_splits, 8, lanes), jnp.float32),
        grid=grid,
        in_specs=[
            pl.BlockSpec((1, tb, lanes), lambda s, i: (s, i, 0)),
            pl.BlockSpec((1, tb, lanes), lambda s, i: (s, i, 0)),
        ],
        out_specs=pl.BlockSpec((1, 8, lanes), lambda s, i: (s, 0, 0)),
        scratch_shapes=[pltpu.VMEM((8, lanes), jnp.float32)],
        compiler_params=pltpu.CompilerParams(
            dimension_semantics=("parallel", "arbitrary"),  # split axis shards across TCs on v7x
            vmem_limit_bytes=_vmem_limit_bytes(cap),
        ),
        cost_estimate=pl.CostEstimate(
            flops=int(8 * padded_total),
            transcendentals=0,
            bytes_accessed=int(8 * padded_total + 4 * n_splits * 8 * lanes),
        ),
    )(xs, ys)
    # Final tiny reduce in JAX (order-invariant mean).
    return jnp.sum(partial_sums) / jnp.float32(n_elem)


# ----------------------------------------------------------------------------
# Host-side optimal assignment (the PyTorch module also runs this on CPU:
# torch.no_grad + .cpu().numpy() + scipy.optimize.linear_sum_assignment).
# TODO(synk): linear_sum_assignment is a sequential, data-dependent algorithm with no
# clean Pallas equivalent; kept on host (scipy if available, numpy Hungarian fallback).
# ----------------------------------------------------------------------------
def _hungarian_np(cost):
    cost = np.asarray(cost, dtype=np.float64)
    n = cost.shape[0]
    INF = 1e18
    u = np.zeros(n + 1)
    v = np.zeros(n + 1)
    p = np.zeros(n + 1, dtype=np.int64)
    way = np.zeros(n + 1, dtype=np.int64)
    for i in range(1, n + 1):
        p[0] = i
        j0 = 0
        minv = np.full(n + 1, INF)
        used = np.zeros(n + 1, dtype=bool)
        while True:
            used[j0] = True
            i0 = p[j0]
            delta = INF
            j1 = -1
            for j in range(1, n + 1):
                if not used[j]:
                    cur = cost[i0 - 1, j - 1] - u[i0] - v[j]
                    if cur < minv[j]:
                        minv[j] = cur
                        way[j] = j0
                    if minv[j] < delta:
                        delta = minv[j]
                        j1 = j
            for j in range(n + 1):
                if used[j]:
                    u[p[j]] += delta
                    v[j] -= delta
                else:
                    minv[j] -= delta
            j0 = j1
            if p[j0] == 0:
                break
        while True:
            j1 = way[j0]
            p[j0] = p[j1]
            j0 = j1
            if j0 == 0:
                break
    col_ind = np.zeros(n, dtype=np.int64)
    for j in range(1, n + 1):
        col_ind[p[j] - 1] = j - 1
    return col_ind


def linear_sum_assignment_host(cost):
    if _scipy_lsa is not None:
        _, col_ind = _scipy_lsa(cost)
        return np.asarray(col_ind, dtype=np.int64)
    return _hungarian_np(cost)


# ----------------------------------------------------------------------------
# WassersteinLoss forward (device stages jitted so pads/casts/norms fuse).
# ----------------------------------------------------------------------------
@jax.jit
def _stage_shuffle_and_cdist(x, key):
    bsize, dim = x.shape
    # u[:, i] = x[randperm(bsize), i]  -- one vectorized gather instead of a per-column loop.
    keys = jax.random.split(key, dim)
    perms = jax.vmap(lambda k: jax.random.permutation(k, bsize))(keys)   # (dim, bsize)
    u = jnp.take_along_axis(x, perms.T, axis=0)                          # (bsize, dim)
    dist = pallas_cdist(x, u)
    return u, dist


@functools.partial(jax.jit, static_argnames=("delta",))
def _stage_huber(x, u, ind, delta):
    u_matched = jnp.take(u, ind, axis=0)
    return pallas_huber_mean(x, u_matched, delta)


def wasserstein_loss(x, delta, key):
    u, dist = _stage_shuffle_and_cdist(x, key)
    # optimal assignment on host (matches the original module's no_grad CPU path)
    ind = linear_sum_assignment_host(np.asarray(jax.device_get(dist), dtype=np.float64))
    return _stage_huber(x, u, jnp.asarray(ind, dtype=jnp.int32), float(delta))


def _huber_ref(x, y, delta):
    d = x.astype(jnp.float32) - y.astype(jnp.float32)
    ad = jnp.abs(d)
    return jnp.mean(jnp.where(ad <= delta, 0.5 * d * d, delta * (ad - 0.5 * delta)))


if __name__ == "__main__":
    key = jax.random.PRNGKey(0)
    k_x, k_perm = jax.random.split(key)

    bsize, dim = 8, 4                     # small shapes consistent with forward: x is (batch, dim)
    x = jax.random.normal(k_x, (bsize, dim), dtype=jnp.float32)
    delta = 1.0

    loss = wasserstein_loss(x, delta, k_perm)
    loss = jax.block_until_ready(loss)
    assert np.isfinite(float(loss)), "loss is not finite"

    # sanity: Pallas Huber-mean matches a pure-JAX reference (exact f32 path)
    xt = jax.random.normal(jax.random.PRNGKey(1), (bsize, dim), dtype=jnp.float32)
    yt = jax.random.normal(jax.random.PRNGKey(2), (bsize, dim), dtype=jnp.float32)
    got = jax.block_until_ready(jax.jit(lambda a, b: pallas_huber_mean(a, b, delta))(xt, yt))
    want = _huber_ref(xt, yt, delta)
    assert np.allclose(np.asarray(got), np.asarray(want), rtol=1e-4, atol=1e-6), \
        f"huber mismatch: {got} vs {want}"

    print("KERNEL_OK")
</pallas_src>

<mosaic_0001>
module attributes {stable_mosaic.version = 11 : i64} {
  func.func @_cdist_kernel(%arg0: i32, %arg1: i32, %arg2: memref<8x4xbf16, #tpu.memory_space<vmem>>, %arg3: memref<128x4xbf16, #tpu.memory_space<vmem>>, %arg4: memref<8x1xf32, #tpu.memory_space<vmem>>, %arg5: memref<1x128xf32, #tpu.memory_space<vmem>>, %arg6: memref<8x128xf32, #tpu.memory_space<vmem>>) attributes {dimension_semantics = [#tpu.dimension_semantics<parallel>, #tpu.dimension_semantics<parallel>], iteration_bounds = array<i64: 1, 1>, scalar_prefetch = 0 : i64, scratch_operands = 0 : i64, tpu.core_type = #tpu.core_type<tc>, window_params = [{transform_indices = @transform_0, window_bounds = array<i64: 8, 4>}, {transform_indices = @transform_1, window_bounds = array<i64: 128, 4>}, {transform_indices = @transform_2, window_bounds = array<i64: 8, 1>}, {transform_indices = @transform_3, window_bounds = array<i64: 1, 128>}, {transform_indices = @transform_4, window_bounds = array<i64: 8, 128>}]} {
    %c0 = arith.constant 0 : index
    %c0_0 = arith.constant 0 : index
    %0 = vector.load %arg2[%c0, %c0_0] : memref<8x4xbf16, #tpu.memory_space<vmem>>, vector<8x4xbf16>
    %c0_1 = arith.constant 0 : index
    %c0_2 = arith.constant 0 : index
    %1 = vector.load %arg3[%c0_1, %c0_2] : memref<128x4xbf16, #tpu.memory_space<vmem>>, vector<128x4xbf16>
    %cst = arith.constant dense<0.000000e+00> : vector<8x128xf32>
    %2 = tpu.matmul %0, %1, %cst {dimension_numbers = #tpu.dot_dimension_numbers<[1], [1], [0], [0], [0, 0, 1, 0], [], []>} : vector<8x4xbf16>, vector<128x4xbf16>, vector<8x128xf32> -> vector<8x128xf32>
    %c0_3 = arith.constant 0 : index
    %c0_4 = arith.constant 0 : index
    %3 = vector.load %arg4[%c0_3, %c0_4] : memref<8x1xf32, #tpu.memory_space<vmem>>, vector<8x1xf32>
    %c0_5 = arith.constant 0 : index
    %c0_6 = arith.constant 0 : index
    %4 = vector.load %arg5[%c0_5, %c0_6] : memref<1x128xf32, #tpu.memory_space<vmem>>, vector<1x128xf32>
    %5 = vector.broadcast %3 : vector<8x1xf32> to vector<8x128xf32>
    %6 = vector.broadcast %4 : vector<1x128xf32> to vector<8x128xf32>
    %7 = arith.addf %5, %6 : vector<8x128xf32>
    %cst_7 = arith.constant 2.000000e+00 : f32
    %8 = vector.broadcast %cst_7 : f32 to vector<8x128xf32>
    %9 = arith.mulf %8, %2 : vector<8x128xf32>
    %10 = arith.subf %7, %9 : vector<8x128xf32>
    %cst_8 = arith.constant 0.000000e+00 : f32
    %11 = vector.broadcast %cst_8 : f32 to vector<8x128xf32>
    %12 = arith.maximumf %10, %11 : vector<8x128xf32>
    %13 = math.sqrt %12 : vector<8x128xf32>
    %c0_9 = arith.constant 0 : index
    %c0_10 = arith.constant 0 : index
    %14 = vector.load %arg6[%c0_9, %c0_10] : memref<8x128xf32, #tpu.memory_space<vmem>>, vector<8x128xf32>
    tpu.vector_store %arg6[%c0_9, %c0_10], %13 {strides = array<i32>} : memref<8x128xf32, #tpu.memory_space<vmem>>, vector<8x128xf32>,
    return
  }
  func.func @transform_0(%arg0: i32, %arg1: i32) -> (i32, i32) {
    %c0_i32 = arith.constant 0 : i32
    %c0_i32_0 = arith.constant 0 : i32
    return %arg0, %c0_i32 : i32, i32
  }
  func.func @transform_1(%arg0: i32, %arg1: i32) -> (i32, i32) {
    %c0_i32 = arith.constant 0 : i32
    %c0_i32_0 = arith.constant 0 : i32
    return %arg1, %c0_i32 : i32, i32
  }
  func.func @transform_2(%arg0: i32, %arg1: i32) -> (i32, i32) {
    %c0_i32 = arith.constant 0 : i32
    %c0_i32_0 = arith.constant 0 : i32
    return %arg0, %c0_i32 : i32, i32
  }
  func.func @transform_3(%arg0: i32, %arg1: i32) -> (i32, i32) {
    %c0_i32 = arith.constant 0 : i32
    %c0_i32_0 = arith.constant 0 : i32
    return %c0_i32, %arg1 : i32, i32
  }
  func.func @transform_4(%arg0: i32, %arg1: i32) -> (i32, i32) {
    %c0_i32 = arith.constant 0 : i32
    return %arg0, %arg1 : i32, i32
  }
}

</mosaic_0001>

<llo_original>
// kernel: _stage_shuffle_and_cdist.3
$region0: #{_stage_shuffle_and_cdist.3}
  #allocation0 [shape = 'u32[]', space=smem, size = 0x4, offset = 0x4, fixed_abs, tag = 'smem constant byte address 0x4 - core index']
  #allocation1 [shape = 'u32[144,128]{1,0:T(1,128)}', space=vmem, size = 0x12000, scoped, tag = 'internal scratch']
  %s0 = inlined_call_operand.vmem [shape: bf16[8,4], index: 0, kind: input, shape index: {}]
  %s1 = inlined_call_operand.vmem [shape: bf16[128,4], index: 1, kind: input, shape index: {}]
  %s2 = inlined_call_operand.vmem [shape: f32[8,1], index: 2, kind: input, shape index: {}]
  %s3 = inlined_call_operand.vmem [shape: f32[1,128], index: 3, kind: input, shape index: {}]
  %s4 = inlined_call_operand.hbm [shape: f32[8,128], index: 4, kind: output, shape index: {}]
  %s5 = sld [smem:[#allocation0]]
  $region26: #{_stage_shuffle_and_cdist.3} parent=0
    _
  %s7 = ssub.s32 1, %s5
  %s8 = scalar_select 0, %s7, %s5
  $region1: #{_stage_shuffle_and_cdist.3} parent=0
    #allocation2 [shape = 'u8[4096]{0}', space=vmem, size = 0x1000, scoped, tag = 'output window, operand 0, single buffered']
    #allocation3 [shape = 's32[1]{0}', space=sflag, size = 0x4, scoped, tag = 'scoped memory for _stage_shuffle_and_cdist.3']
    %9 = vsyncpa [#allocation3], 0
    // Predicated region
    $region2: #{_stage_shuffle_and_cdist.3} parent=1 // pred_check
      _
    $region3: #{_stage_shuffle_and_cdist.3} parent=1 // pred_check_branch
      %11 = sbr.rel (0) target = $region5
    $region4: #{_stage_shuffle_and_cdist.3} parent=1 // pred_region
      _
    $region5: #{_stage_shuffle_and_cdist.3} parent=1 // pred_fallthru
      _
    // Predicated region
    $region6: #{_stage_shuffle_and_cdist.3} parent=1 // pred_check
      _
    $region7: #{_stage_shuffle_and_cdist.3} parent=1 // pred_check_branch
      %13 = sbr.rel (0) target = $region9
    $region8: #{_stage_shuffle_and_cdist.3} parent=1 // pred_region
      _
    $region9: #{_stage_shuffle_and_cdist.3} parent=1 // pred_fallthru
      _
    // Predicated region
    $region10: #{_stage_shuffle_and_cdist.3} parent=1 // pred_check
      _
    $region11: #{_stage_shuffle_and_cdist.3} parent=1 // pred_check_branch
      %15 = sbr.rel (0) target = $region13
    $region12: #{_stage_shuffle_and_cdist.3} parent=1 // pred_region
      _
    $region13: #{_stage_shuffle_and_cdist.3} parent=1 // pred_fallthru
      _
    // Predicated region
    $region14: #{_stage_shuffle_and_cdist.3} parent=1 // pred_check
      _
    $region15: #{_stage_shuffle_and_cdist.3} parent=1 // pred_check_branch
      %17 = sbr.rel (0) target = $region17
    $region16: #{_stage_shuffle_and_cdist.3} parent=1 // pred_region
      _
    $region17: #{_stage_shuffle_and_cdist.3} parent=1 // pred_fallthru
      _
    %v19 = vld [vmem:[%s0] sm:$0xf]
    %v20 = vld [vmem:[%s1] sm:$0xf]
    %v21 = vld [vmem:[%s1 + $0x4] sm:$0xf]
    %v22 = vld [vmem:[%s1 + $0x8] sm:$0xf]
    %v23 = vld [vmem:[%s1 + $0xc] sm:$0xf]
    %v24 = vld [vmem:[%s1 + $0x10] sm:$0xf]
    %v25 = vld [vmem:[%s1 + $0x14] sm:$0xf]
    %v26 = vld [vmem:[%s1 + $0x18] sm:$0xf]
    %v27 = vld [vmem:[%s1 + $0x1c] sm:$0xf]
    %v28 = vld [vmem:[%s1 + $0x20] sm:$0xf]
    %v29 = vld [vmem:[%s1 + $0x24] sm:$0xf]
    %v30 = vld [vmem:[%s1 + $0x28] sm:$0xf]
    %v31 = vld [vmem:[%s1 + $0x2c] sm:$0xf]
    %v32 = vld [vmem:[%s1 + $0x30] sm:$0xf]
    %v33 = vld [vmem:[%s1 + $0x34] sm:$0xf]
    %v34 = vld [vmem:[%s1 + $0x38] sm:$0xf]
    %v35 = vld [vmem:[%s1 + $0x3c] sm:$0xf]
    %v52 = vunpack.c.l.b16 %v20
    %v53 = vunpack.c.l.b16 %v21
    %v54 = vunpack.c.l.b16 %v22
    %v55 = vunpack.c.l.b16 %v23
    %v56 = vunpack.c.l.b16 %v24
    %v57 = vunpack.c.l.b16 %v25
    %v58 = vunpack.c.l.b16 %v26
    %v59 = vunpack.c.l.b16 %v27
    %v60 = vunpack.c.l.b16 %v28
    %v61 = vunpack.c.l.b16 %v29
    %v62 = vunpack.c.l.b16 %v30
    %v63 = vunpack.c.l.b16 %v31
    %v64 = vunpack.c.l.b16 %v32
    %v65 = vunpack.c.l.b16 %v33
    %v66 = vunpack.c.l.b16 %v34
    %v67 = vunpack.c.l.b16 %v35
    %v68 = vpack.c.b16 %v53, %v52
    %v69 = vpack.c.b16 %v55, %v54
    %v70 = vpack.c.b16 %v57, %v56
    %v71 = vpack.c.b16 %v59, %v58
    %v72 = vpack.c.b16 %v61, %v60
    %v73 = vpack.c.b16 %v63, %v62
    %v74 = vpack.c.b16 %v65, %v64
    %v75 = vpack.c.b16 %v67, %v66
    %vm76 = vcmask 31744
    %v78 = vsel %vm76, %v19, 0
    %v81 = vsel %vm76, %v68, 0
    %v84 = vsel %vm76, %v69, 0
    %v87 = vsel %vm76, %v70, 0
    %v90 = vsel %vm76, %v71, 0
    %v93 = vsel %vm76, %v72, 0
    %v96 = vsel %vm76, %v73, 0
    %v99 = vsel %vm76, %v74, 0
    %v102 = vsel %vm76, %v75, 0
    %104 = vmatprep.subr.bf16.mxu0 0
    %105 = vmatpush1.bf16.xpose.msra.mxu0 %v102
    %106 = vmatprep.subr.bf16.mxu0 0
    %107 = vmatpush1.bf16.xpose.msra.mxu0 %v99
    %108 = vmatprep.subr.bf16.mxu0 0
    %109 = vmatpush1.bf16.xpose.msra.mxu0 %v96
    %110 = vmatprep.subr.bf16.mxu0 0
    %111 = vmatpush1.bf16.xpose.msra.mxu0 %v93
    %112 = vmatprep.subr.bf16.mxu0 0
    %113 = vmatpush1.bf16.xpose.msra.mxu0 %v90
    %114 = vmatprep.subr.bf16.mxu0 0
    %115 = vmatpush1.bf16.xpose.msra.mxu0 %v87
    %116 = vmatprep.subr.bf16.mxu0 0
    %117 = vmatpush1.bf16.xpose.msra.mxu0 %v84
    %118 = vmatprep.subr.bf16.mxu0 0
    %119 = vmatpush1.bf16.xpose.msra.mxu0 %v81
    %120 = vmatprep.subr.bf16.mxu0 0
    %121 = vmatpush2.bf16.xpose.msra.mxu0 0
    %122 = vmatprep.subr.bf16.mxu0 0
    %123 = vmatpush2.bf16.xpose.msra.mxu0 0
    %124 = vmatprep.subr.bf16.mxu0 0
    %125 = vmatpush2.bf16.xpose.msra.mxu0 0
    %126 = vmatprep.subr.bf16.mxu0 0
    %127 = vmatpush2.bf16.xpose.msra.mxu0 0
    %128 = vmatprep.subr.bf16.mxu0 0
    %129 = vmatpush2.bf16.xpose.msra.mxu0 0
    %130 = vmatprep.subr.bf16.mxu0 0
    %131 = vmatpush2.bf16.xpose.msra.mxu0 0
    %132 = vmatprep.subr.bf16.mxu0 0
    %133 = vmatpush2.bf16.xpose.msra.mxu0 0
    %134 = vmatprep.subr.bf16.mxu0 0
    %135 = vmatpush2.bf16.xpose.msra.mxu0 0
    %136 = vmatprep.mubr.bf16.mxu0 0
    %137 = vmatmul.mubr.bf16.gmra.mxu0 %v78
    %v138 = vpop.f32.mrf.mxu0
    %v139 = vadd.f32 0.0, %v138
    %v140 = vpop.f32.mrf.mxu0
    %v141 = vpop.f32.mrf.mxu0
    %v142 = vpop.f32.mrf.mxu0
    %143 = vdwg.mxu0
    %v144 = vld [vmem:[%s2] sm:$0xff]
    %v145 = vld [vmem:[%s3] sm:$0x1]
    %147 = vset.pattern.permute.xlu0 0
    %148 = vperm.xlu0 %147, %v144
    %v149 = vpop.permute.xlu0 %148
    %v152 = vlaneseq
    %v153 = vshrl.u32 %v152, 7
    %v154 = vsub.s32 0, %v153
    %v155 = vrot.slane %v145, %v154
    %v157 = vadd.f32 %v149, %v155
    %v158 = vmul.f32 %v139, 2.0
    %v159 = vsub.f32 %v157, %v158
    %v160 = vmax.f32 %v159, 0.0
    %v161 = vrsqrt.pop %v160
    %v162 = vmul.f32 %v160, %v161
    %vm163 = vcmp.eq.f32.partialorder %v160, inf
    %v164 = vsel %vm163, %v160, %v162
    %vm165 = vcmp.eq.f32.partialorder %v160, 0.0
    %v166 = vand.u32 %v160, 2147483648
    %v167 = vsel %vm165, %v166, %v164
    %168 = vst [vmem:[#allocation2] sm:$0xff] %v167
    // Predicated region
    $region18: #{_stage_shuffle_and_cdist.3} parent=1 // pred_check
      _
    $region19: #{_stage_shuffle_and_cdist.3} parent=1 // pred_check_branch
      %170 = sbr.rel (0) target = $region21
    $region20: #{_stage_shuffle_and_cdist.3} parent=1 // pred_region
      %s172 = ssub.s32 128, 128
      %173 = vsyncadd [#allocation3], %s172
      %s175 = sshll.u32 [#allocation2], 4
      %s176 = int_to_ptr.vmem [resolvable:$true] %s175
      %178 = dma.vmem_to_hbm [thread:$0]  %s176, 128, %s4, [#allocation3]
    $region21: #{_stage_shuffle_and_cdist.3} parent=1 // pred_fallthru
      _
    // Predicated region
    $region22: #{_stage_shuffle_and_cdist.3} parent=1 // pred_check
      _
    $region23: #{_stage_shuffle_and_cdist.3} parent=1 // pred_check_branch
      %180 = sbr.rel (0) target = $region25
    $region24: #{_stage_shuffle_and_cdist.3} parent=1 // pred_region
      %181 = dma.done [#allocation3], 128
    $region25: #{_stage_shuffle_and_cdist.3} parent=1 // pred_fallthru
      _
    %182 = vsyncpa [#allocation3], 1

</llo_original>
